<compile_context>
chip_gen: v7x
topology: tpu7x:2x2x1
jax: 0.10.0
libtpu: 0.0.40
codegen_flags: <defaults>
</compile_context>

<pallas_src>
import functools

import jax
import jax.numpy as jnp
from jax.experimental import pallas as pl
from jax.experimental.pallas import tpu as pltpu

# ---------------- model dimensions (implied by the forward's reshapes) ------
N_HAND_JOINTS = 15            # lhand/rhand motion reshaped to (..., -1, 6)
F_HAND = N_HAND_JOINTS * 6    # 90 features per frame per hand
F_SPARSE = 3 * 18             # sparse reshaped to (bs, seq, 3, 18) -> 54
H_BODY = 64                   # body_diffusion hidden
D_BODY = 32                   # body latent dim
H_VAE = 64                    # hand VAE encoder hidden
D_LAT = 16                    # per-hand latent dim
D_LATENT_IN = 2 * D_LAT       # 32, concat of both hand latents
H_DIFF = 128                  # hand_diffusion hidden
D_OUT = D_LATENT_IN           # hand_diffusion predicts the latent sample

# Fused first-layer output columns: [c_hd(128) | hb(64) | hl(64) | hr(64)]
C_HB = H_DIFF                          # 128
C_HL = H_DIFF + H_BODY                 # 192
C_HR = H_DIFF + H_BODY + H_VAE         # 256
H_CAT = H_BODY + 2 * H_VAE             # 192
W1_N = H_DIFF + H_CAT                  # 320

Z2_DIM = D_LATENT_IN + D_BODY          # 64  ([zl | zr | body_latent])
W23_N = H_DIFF + D_LATENT_IN           # 160 ([hd_pre | latent])
Y_PAD = 128                            # lane-dense output width

TM_MAX = 1024                          # max token tile (rows per grid step)
W_DTYPE = jnp.bfloat16


def _round_up(a, b):
    return (a + b - 1) // b * b


def _choose_tm(n, tm_max=TM_MAX):
    """Pick a token tile: multiple of 16, <= tm_max, >=2 grid steps if possible."""
    tm_max = max(16, (int(tm_max) // 16) * 16)
    n16 = _round_up(max(int(n), 1), 16)
    if n16 > tm_max:
        return tm_max
    if n16 >= 32:
        # Split small problems into (at least) two grid steps so both v7x
        # TensorCores get work under dimension_semantics=('parallel',).
        return max(16, _round_up((n16 + 1) // 2, 16))
    return 16


def _gelu_tanh(x):
    return 0.5 * x * (1.0 + jnp.tanh(0.7978845608028654 * (x + 0.044715 * x * x * x)))


# ------------------------------ kernel ---------------------------------------
def hand_ldm_kernel(sp_ref, lh_ref, rh_ref, w_sp_ref, w_lh_ref, w_rh_ref,
                    w23_ref, w4_ref, b1_ref, bo_ref, y_ref):
    f32 = jnp.float32
    sp = sp_ref[...].astype(W_DTYPE)          # (TM, 54)
    lh = lh_ref[...].astype(W_DTYPE)          # (TM, 90)
    rh = rh_ref[...].astype(W_DTYPE)          # (TM, 90)

    # Fused first layers of body_diffusion / lhand_vae / rhand_vae plus the
    # sparse-conditioning term of hand_diffusion.  b1's c_hd columns already
    # contain bd1 + b2 @ W3 (folded from the fused W2/W3 stage).
    r1 = (jnp.dot(sp, w_sp_ref[...], preferred_element_type=f32)
          + jnp.dot(lh, w_lh_ref[...], preferred_element_type=f32)
          + jnp.dot(rh, w_rh_ref[...], preferred_element_type=f32)
          + b1_ref[...])                                            # (TM, 320)

    c_hd = r1[:, :H_DIFF]                                           # (TM, 128)
    h = jnp.tanh(r1[:, H_DIFF:]).astype(W_DTYPE)                    # (TM, 192) [hb|hl|hr]

    # Fused second + third linear stages (no nonlinearity between them):
    # columns [hd_pre(128) | latent(32)] where latent = [zl | zr] (un-biased).
    r2 = jnp.dot(h, w23_ref[...], preferred_element_type=f32)       # (TM, 160)

    hd = _gelu_tanh(r2[:, :H_DIFF] + c_hd).astype(W_DTYPE)          # (TM, 128)
    latent = r2[:, H_DIFF:]                                         # (TM, 32)
    out = jnp.dot(hd, w4_ref[...], preferred_element_type=f32)      # (TM, 32)

    # Single lane-dense 128-wide store: [model_output | latent_input | 0 pad].
    # bo carries bd2 (cols 0:32) and the latent bias [bl2|br2] (cols 32:64).
    tm = out.shape[0]
    pad = jnp.zeros((tm, Y_PAD - D_OUT - D_LATENT_IN), f32)
    y_ref[...] = jnp.concatenate([out, latent, pad], axis=-1) + bo_ref[...]


# ------------------------------ params ---------------------------------------
def make_params(key):
    """Deterministic synthetic weights (shapes implied by the forward pass)."""
    def lin(k, fan_in, fan_out):
        kw, kb = jax.random.split(k)
        scale = 1.0 / jnp.sqrt(jnp.float32(fan_in))
        w = jax.random.normal(kw, (fan_in, fan_out), jnp.float32) * scale
        b = jax.random.normal(kb, (1, fan_out), jnp.float32) * 0.01
        return w, b

    ks = jax.random.split(key, 12)
    wb1, bb1 = lin(ks[0], F_SPARSE, H_BODY)
    wb2, bb2 = lin(ks[1], H_BODY, D_BODY)
    wl1x, bl1 = lin(ks[2], F_HAND, H_VAE)
    wl1c, _ = lin(ks[3], F_SPARSE, H_VAE)
    wl2, bl2 = lin(ks[4], H_VAE, D_LAT)
    wr1x, br1 = lin(ks[5], F_HAND, H_VAE)
    wr1c, _ = lin(ks[6], F_SPARSE, H_VAE)
    wr2, br2 = lin(ks[7], H_VAE, D_LAT)
    wd1z, bd1 = lin(ks[8], D_LATENT_IN, H_DIFF)
    wd1c, _ = lin(ks[9], F_SPARSE, H_DIFF)
    wd1b, _ = lin(ks[10], D_BODY, H_DIFF)
    wd2, bd2 = lin(ks[11], H_DIFF, D_OUT)
    return (wb1, bb1, wb2, bb2,
            wl1x, wl1c, bl1, wl2, bl2,
            wr1x, wr1c, br1, wr2, br2,
            wd1z, wd1c, wd1b, bd1, wd2, bd2)


def pack_params(params):
    """Pack per-submodel weights into fused block matrices (call ONCE; frozen)."""
    (wb1, bb1, wb2, bb2,
     wl1x, wl1c, bl1, wl2, bl2,
     wr1x, wr1c, br1, wr2, br2,
     wd1z, wd1c, wd1b, bd1, wd2, bd2) = params

    # First-layer row blocks; columns [c_hd(128) | hb(64) | hl(64) | hr(64)].
    w_sp = jnp.zeros((F_SPARSE, W1_N), jnp.float32)
    w_sp = w_sp.at[:, 0:H_DIFF].set(wd1c)
    w_sp = w_sp.at[:, C_HB:C_HB + H_BODY].set(wb1)
    w_sp = w_sp.at[:, C_HL:C_HL + H_VAE].set(wl1c)
    w_sp = w_sp.at[:, C_HR:C_HR + H_VAE].set(wr1c)
    w_lh = jnp.zeros((F_HAND, W1_N), jnp.float32).at[:, C_HL:C_HL + H_VAE].set(wl1x)
    w_rh = jnp.zeros((F_HAND, W1_N), jnp.float32).at[:, C_HR:C_HR + H_VAE].set(wr1x)

    # W2 (192, 64): block-diagonal map [hb|hl|hr] -> [zl | zr | body_latent].
    w2 = jnp.zeros((H_CAT, Z2_DIM), jnp.float32)
    w2 = w2.at[0:H_BODY, D_LATENT_IN:].set(wb2)
    w2 = w2.at[H_BODY:H_BODY + H_VAE, 0:D_LAT].set(wl2)
    w2 = w2.at[H_BODY + H_VAE:, D_LAT:D_LATENT_IN].set(wr2)
    b2 = jnp.concatenate([bl2, br2, bb2], axis=-1)              # (1, 64)

    # W3 (64, 128): rows match z2 columns [zl|zr | body_latent].
    w3 = jnp.concatenate([wd1z, wd1b], axis=0)

    # Fused W23 (192, 160) = [W2@W3 | latent passthrough], composed in f32.
    w23 = jnp.concatenate([w2 @ w3, w2[:, :D_LATENT_IN]], axis=-1)

    # Fused first-layer bias (1, 320): c_hd columns absorb bd1 + b2@W3.
    b1 = jnp.concatenate([bd1 + b2 @ w3, bb1, bl1, br1], axis=-1)

    # Output bias (1, 128): [bd2 | latent bias (bl2,br2) | zeros].
    bo = jnp.concatenate(
        [bd2, bl2, br2,
         jnp.zeros((1, Y_PAD - D_OUT - D_LATENT_IN), jnp.float32)], axis=-1)

    return (w_sp.astype(W_DTYPE), w_lh.astype(W_DTYPE), w_rh.astype(W_DTYPE),
            w23.astype(W_DTYPE), wd2.astype(W_DTYPE), b1, bo)


# ------------------------------ wrapper ---------------------------------------
@functools.partial(jax.jit, static_argnames=("tm_max",))
def hand_ldm_forward(lhand_motion, rhand_motion, sparse, packed, tm_max=TM_MAX):
    """Mirrors HandLDMTrainer.forward(batch) -> (model_output, latent_input)."""
    bs, seq = lhand_motion.shape[:2]
    n = bs * seq

    # Free reshapes only -- no concat / pad / cast materialization in HBM.
    lh = lhand_motion.reshape(n, F_HAND)
    rh = rhand_motion.reshape(n, F_HAND)
    sp = sparse.reshape(n, F_SPARSE)

    w_sp, w_lh, w_rh, w23, w4, b1, bo = packed

    tm = _choose_tm(n, tm_max)
    grid = (pl.cdiv(n, tm),)                    # partial last block is clipped

    row_spec = lambda f: pl.BlockSpec((tm, f), lambda i: (i, 0))
    full_spec = lambda a: pl.BlockSpec(a.shape, lambda i: (0, 0))

    y = pl.pallas_call(
        hand_ldm_kernel,
        out_shape=jax.ShapeDtypeStruct((n, Y_PAD), jnp.float32),
        grid=grid,
        in_specs=[row_spec(F_SPARSE), row_spec(F_HAND), row_spec(F_HAND),
                  full_spec(w_sp), full_spec(w_lh), full_spec(w_rh),
                  full_spec(w23), full_spec(w4),
                  full_spec(b1), full_spec(bo)],
        out_specs=row_spec(Y_PAD),
        compiler_params=pltpu.CompilerParams(
            dimension_semantics=("parallel",),
            vmem_limit_bytes=32 * 1024 * 1024,
        ),
    )(sp, lh, rh, w_sp, w_lh, w_rh, w23, w4, b1, bo)

    model_output = y[:, :D_OUT].reshape(bs, seq, D_OUT)
    latent_input = y[:, D_OUT:D_OUT + D_LATENT_IN].reshape(bs, seq, D_LATENT_IN)
    return model_output, latent_input


# ------------------------------ reference -------------------------------------
def hand_ldm_forward_ref(lhand_motion, rhand_motion, sparse, params):
    """Pure-JAX unfused reference of the same math (bf16 matmul inputs)."""
    (wb1, bb1, wb2, bb2,
     wl1x, wl1c, bl1, wl2, bl2,
     wr1x, wr1c, br1, wr2, br2,
     wd1z, wd1c, wd1b, bd1, wd2, bd2) = params
    bs, seq = lhand_motion.shape[:2]
    n = bs * seq
    lh = lhand_motion.reshape(n, F_HAND)
    rh = rhand_motion.reshape(n, F_HAND)
    sp = sparse.reshape(n, F_SPARSE)

    bf = lambda a: a.astype(W_DTYPE)
    mm = lambda a, w: jnp.dot(bf(a), bf(w), preferred_element_type=jnp.float32)

    body_latent = mm(jnp.tanh(mm(sp, wb1) + bb1), wb2) + bb2
    zl = mm(jnp.tanh(mm(lh, wl1x) + mm(sp, wl1c) + bl1), wl2) + bl2
    zr = mm(jnp.tanh(mm(rh, wr1x) + mm(sp, wr1c) + br1), wr2) + br2
    z = jnp.concatenate([zl, zr], axis=-1)
    hd = _gelu_tanh(mm(z, wd1z) + mm(sp, wd1c) + mm(body_latent, wd1b) + bd1)
    out = mm(hd, wd2) + bd2
    return out.reshape(bs, seq, D_OUT), z.reshape(bs, seq, D_LATENT_IN)


if __name__ == "__main__":
    bs, seq = 2, 8
    key = jax.random.PRNGKey(0)
    k_l, k_r, k_s, k_p = jax.random.split(key, 4)

    # batch[1], batch[2]: hand motions (bs, seq, 15*6); batch[3]: sparse (bs, seq, 3*18)
    lhand_motion = jax.random.normal(k_l, (bs, seq, F_HAND), jnp.float32)
    rhand_motion = jax.random.normal(k_r, (bs, seq, F_HAND), jnp.float32)
    sparse = jax.random.normal(k_s, (bs, seq, F_SPARSE), jnp.float32)

    params = make_params(k_p)
    packed = pack_params(params)      # frozen sub-model weights: pack once
    packed = jax.block_until_ready(packed)

    model_output, latent_input = hand_ldm_forward(
        lhand_motion, rhand_motion, sparse, packed)
    jax.block_until_ready((model_output, latent_input))

    ref_out, ref_lat = hand_ldm_forward_ref(
        lhand_motion, rhand_motion, sparse, params)
    assert model_output.shape == (bs, seq, D_OUT)
    assert latent_input.shape == (bs, seq, D_LATENT_IN)
    # Tolerance covers bf16 matmul inputs plus the W2@W3 fusion (composed in
    # f32 in the kernel vs an intermediate bf16 rounding in the unfused ref).
    assert jnp.allclose(model_output, ref_out, atol=5e-2, rtol=5e-2)
    assert jnp.allclose(latent_input, ref_lat, atol=5e-2, rtol=5e-2)

    print("KERNEL_OK")
</pallas_src>

<mosaic_0001>
module attributes {stable_mosaic.version = 11 : i64} {
  func.func @hand_ldm_kernel(%arg0: i32, %arg1: memref<16x54xf32, #tpu.memory_space<vmem>>, %arg2: memref<16x90xf32, #tpu.memory_space<vmem>>, %arg3: memref<16x90xf32, #tpu.memory_space<vmem>>, %arg4: memref<54x320xbf16, #tpu.memory_space<vmem>>, %arg5: memref<90x320xbf16, #tpu.memory_space<vmem>>, %arg6: memref<90x320xbf16, #tpu.memory_space<vmem>>, %arg7: memref<192x160xbf16, #tpu.memory_space<vmem>>, %arg8: memref<128x32xbf16, #tpu.memory_space<vmem>>, %arg9: memref<1x320xf32, #tpu.memory_space<vmem>>, %arg10: memref<1x128xf32, #tpu.memory_space<vmem>>, %arg11: memref<16x128xf32, #tpu.memory_space<vmem>>) attributes {dimension_semantics = [#tpu.dimension_semantics<parallel>], iteration_bounds = array<i64: 1>, scalar_prefetch = 0 : i64, scratch_operands = 0 : i64, tpu.core_type = #tpu.core_type<tc>, window_params = [{transform_indices = @transform_0, window_bounds = array<i64: 16, 54>}, {transform_indices = @transform_1, window_bounds = array<i64: 16, 90>}, {transform_indices = @transform_2, window_bounds = array<i64: 16, 90>}, {pipeline_mode = #tpu.pipeline_mode<synchronous>, transform_indices = @transform_3, window_bounds = array<i64: 54, 320>}, {pipeline_mode = #tpu.pipeline_mode<synchronous>, transform_indices = @transform_4, window_bounds = array<i64: 90, 320>}, {pipeline_mode = #tpu.pipeline_mode<synchronous>, transform_indices = @transform_5, window_bounds = array<i64: 90, 320>}, {pipeline_mode = #tpu.pipeline_mode<synchronous>, transform_indices = @transform_6, window_bounds = array<i64: 192, 160>}, {pipeline_mode = #tpu.pipeline_mode<synchronous>, transform_indices = @transform_7, window_bounds = array<i64: 128, 32>}, {pipeline_mode = #tpu.pipeline_mode<synchronous>, transform_indices = @transform_8, window_bounds = array<i64: 1, 320>}, {pipeline_mode = #tpu.pipeline_mode<synchronous>, transform_indices = @transform_9, window_bounds = array<i64: 1, 128>}, {transform_indices = @transform_10, window_bounds = array<i64: 16, 128>}]} {
    %c0 = arith.constant 0 : index
    %c0_0 = arith.constant 0 : index
    %0 = vector.load %arg1[%c0, %c0_0] : memref<16x54xf32, #tpu.memory_space<vmem>>, vector<16x54xf32>
    %1 = arith.truncf %0 : vector<16x54xf32> to vector<16x54xbf16>
    %c0_1 = arith.constant 0 : index
    %c0_2 = arith.constant 0 : index
    %2 = vector.load %arg2[%c0_1, %c0_2] : memref<16x90xf32, #tpu.memory_space<vmem>>, vector<16x90xf32>
    %3 = arith.truncf %2 : vector<16x90xf32> to vector<16x90xbf16>
    %c0_3 = arith.constant 0 : index
    %c0_4 = arith.constant 0 : index
    %4 = vector.load %arg3[%c0_3, %c0_4] : memref<16x90xf32, #tpu.memory_space<vmem>>, vector<16x90xf32>
    %5 = arith.truncf %4 : vector<16x90xf32> to vector<16x90xbf16>
    %c0_5 = arith.constant 0 : index
    %c0_6 = arith.constant 0 : index
    %6 = vector.load %arg4[%c0_5, %c0_6] : memref<54x320xbf16, #tpu.memory_space<vmem>>, vector<54x320xbf16>
    %cst = arith.constant dense<0.000000e+00> : vector<16x320xf32>
    %7 = tpu.matmul %1, %6, %cst {dimension_numbers = #tpu.dot_dimension_numbers<[1], [0], [0], [1], [0, 0, 1, 1], [], []>} : vector<16x54xbf16>, vector<54x320xbf16>, vector<16x320xf32> -> vector<16x320xf32>
    %c0_7 = arith.constant 0 : index
    %c0_8 = arith.constant 0 : index
    %8 = vector.load %arg5[%c0_7, %c0_8] : memref<90x320xbf16, #tpu.memory_space<vmem>>, vector<90x320xbf16>
    %cst_9 = arith.constant dense<0.000000e+00> : vector<16x320xf32>
    %9 = tpu.matmul %3, %8, %cst_9 {dimension_numbers = #tpu.dot_dimension_numbers<[1], [0], [0], [1], [0, 0, 1, 1], [], []>} : vector<16x90xbf16>, vector<90x320xbf16>, vector<16x320xf32> -> vector<16x320xf32>
    %10 = arith.addf %7, %9 : vector<16x320xf32>
    %c0_10 = arith.constant 0 : index
    %c0_11 = arith.constant 0 : index
    %11 = vector.load %arg6[%c0_10, %c0_11] : memref<90x320xbf16, #tpu.memory_space<vmem>>, vector<90x320xbf16>
    %cst_12 = arith.constant dense<0.000000e+00> : vector<16x320xf32>
    %12 = tpu.matmul %5, %11, %cst_12 {dimension_numbers = #tpu.dot_dimension_numbers<[1], [0], [0], [1], [0, 0, 1, 1], [], []>} : vector<16x90xbf16>, vector<90x320xbf16>, vector<16x320xf32> -> vector<16x320xf32>
    %13 = arith.addf %10, %12 : vector<16x320xf32>
    %c0_13 = arith.constant 0 : index
    %c0_14 = arith.constant 0 : index
    %14 = vector.load %arg9[%c0_13, %c0_14] : memref<1x320xf32, #tpu.memory_space<vmem>>, vector<1x320xf32>
    %15 = vector.broadcast %14 : vector<1x320xf32> to vector<16x320xf32>
    %16 = arith.addf %13, %15 : vector<16x320xf32>
    %17 = vector.extract_strided_slice %16 {offsets = [0, 0], sizes = [16, 128], strides = [1, 1]} : vector<16x320xf32> to vector<16x128xf32>
    %18 = vector.extract_strided_slice %16 {offsets = [0, 128], sizes = [16, 192], strides = [1, 1]} : vector<16x320xf32> to vector<16x192xf32>
    %19 = math.tanh %18 : vector<16x192xf32>
    %20 = arith.truncf %19 : vector<16x192xf32> to vector<16x192xbf16>
    %c0_15 = arith.constant 0 : index
    %c0_16 = arith.constant 0 : index
    %21 = vector.load %arg7[%c0_15, %c0_16] : memref<192x160xbf16, #tpu.memory_space<vmem>>, vector<192x160xbf16>
    %cst_17 = arith.constant dense<0.000000e+00> : vector<16x160xf32>
    %22 = tpu.matmul %20, %21, %cst_17 {dimension_numbers = #tpu.dot_dimension_numbers<[1], [0], [0], [1], [0, 0, 1, 1], [], []>} : vector<16x192xbf16>, vector<192x160xbf16>, vector<16x160xf32> -> vector<16x160xf32>
    %23 = vector.extract_strided_slice %22 {offsets = [0, 0], sizes = [16, 128], strides = [1, 1]} : vector<16x160xf32> to vector<16x128xf32>
    %24 = arith.addf %23, %17 : vector<16x128xf32>
    %cst_18 = arith.constant 5.000000e-01 : f32
    %25 = vector.broadcast %cst_18 : f32 to vector<16x128xf32>
    %26 = arith.mulf %25, %24 : vector<16x128xf32>
    %cst_19 = arith.constant 4.471500e-02 : f32
    %27 = vector.broadcast %cst_19 : f32 to vector<16x128xf32>
    %28 = arith.mulf %27, %24 : vector<16x128xf32>
    %29 = arith.mulf %28, %24 : vector<16x128xf32>
    %30 = arith.mulf %29, %24 : vector<16x128xf32>
    %31 = arith.addf %24, %30 : vector<16x128xf32>
    %cst_20 = arith.constant 0.797884583 : f32
    %32 = vector.broadcast %cst_20 : f32 to vector<16x128xf32>
    %33 = arith.mulf %32, %31 : vector<16x128xf32>
    %34 = math.tanh %33 : vector<16x128xf32>
    %cst_21 = arith.constant 1.000000e+00 : f32
    %35 = vector.broadcast %cst_21 : f32 to vector<16x128xf32>
    %36 = arith.addf %35, %34 : vector<16x128xf32>
    %37 = arith.mulf %26, %36 : vector<16x128xf32>
    %38 = arith.truncf %37 : vector<16x128xf32> to vector<16x128xbf16>
    %39 = vector.extract_strided_slice %22 {offsets = [0, 128], sizes = [16, 32], strides = [1, 1]} : vector<16x160xf32> to vector<16x32xf32>
    %c0_22 = arith.constant 0 : index
    %c0_23 = arith.constant 0 : index
    %40 = vector.load %arg8[%c0_22, %c0_23] : memref<128x32xbf16, #tpu.memory_space<vmem>>, vector<128x32xbf16>
    %cst_24 = arith.constant dense<0.000000e+00> : vector<16x32xf32>
    %41 = tpu.matmul %38, %40, %cst_24 {dimension_numbers = #tpu.dot_dimension_numbers<[1], [0], [0], [1], [0, 0, 1, 1], [], []>} : vector<16x128xbf16>, vector<128x32xbf16>, vector<16x32xf32> -> vector<16x32xf32>
    %cst_25 = arith.constant 0.000000e+00 : f32
    %42 = vector.broadcast %cst_25 : f32 to vector<16x64xf32>
    %43 = tpu.concatenate %41, %39, %42 in 1 : vector<16x32xf32>, vector<16x32xf32>, vector<16x64xf32> -> vector<16x128xf32>
    %c0_26 = arith.constant 0 : index
    %c0_27 = arith.constant 0 : index
    %44 = vector.load %arg10[%c0_26, %c0_27] : memref<1x128xf32, #tpu.memory_space<vmem>>, vector<1x128xf32>
    %45 = vector.broadcast %44 : vector<1x128xf32> to vector<16x128xf32>
    %46 = arith.addf %43, %45 : vector<16x128xf32>
    %c0_28 = arith.constant 0 : index
    %c0_29 = arith.constant 0 : index
    %47 = vector.load %arg11[%c0_28, %c0_29] : memref<16x128xf32, #tpu.memory_space<vmem>>, vector<16x128xf32>
    tpu.vector_store %arg11[%c0_28, %c0_29], %46 {strides = array<i32>} : memref<16x128xf32, #tpu.memory_space<vmem>>, vector<16x128xf32>,
    return
  }
  func.func @transform_0(%arg0: i32) -> (i32, i32) {
    %c0_i32 = arith.constant 0 : i32
    %c0_i32_0 = arith.constant 0 : i32
    return %arg0, %c0_i32 : i32, i32
  }
  func.func @transform_1(%arg0: i32) -> (i32, i32) {
    %c0_i32 = arith.constant 0 : i32
    %c0_i32_0 = arith.constant 0 : i32
    return %arg0, %c0_i32 : i32, i32
  }
  func.func @transform_2(%arg0: i32) -> (i32, i32) {
    %c0_i32 = arith.constant 0 : i32
    %c0_i32_0 = arith.constant 0 : i32
    return %arg0, %c0_i32 : i32, i32
  }
  func.func @transform_3(%arg0: i32) -> (i32, i32) {
    %c0_i32 = arith.constant 0 : i32
    %c0_i32_0 = arith.constant 0 : i32
    %c0_i32_1 = arith.constant 0 : i32
    return %c0_i32, %c0_i32_0 : i32, i32
  }
  func.func @transform_4(%arg0: i32) -> (i32, i32) {
    %c0_i32 = arith.constant 0 : i32
    %c0_i32_0 = arith.constant 0 : i32
    %c0_i32_1 = arith.constant 0 : i32
    return %c0_i32, %c0_i32_0 : i32, i32
  }
  func.func @transform_5(%arg0: i32) -> (i32, i32) {
    %c0_i32 = arith.constant 0 : i32
    %c0_i32_0 = arith.constant 0 : i32
    %c0_i32_1 = arith.constant 0 : i32
    return %c0_i32, %c0_i32_0 : i32, i32
  }
  func.func @transform_6(%arg0: i32) -> (i32, i32) {
    %c0_i32 = arith.constant 0 : i32
    %c0_i32_0 = arith.constant 0 : i32
    %c0_i32_1 = arith.constant 0 : i32
    return %c0_i32, %c0_i32_0 : i32, i32
  }
  func.func @transform_7(%arg0: i32) -> (i32, i32) {
    %c0_i32 = arith.constant 0 : i32
    %c0_i32_0 = arith.constant 0 : i32
    %c0_i32_1 = arith.constant 0 : i32
    return %c0_i32, %c0_i32_0 : i32, i32
  }
  func.func @transform_8(%arg0: i32) -> (i32, i32) {
    %c0_i32 = arith.constant 0 : i32
    %c0_i32_0 = arith.constant 0 : i32
    %c0_i32_1 = arith.constant 0 : i32
    return %c0_i32, %c0_i32_0 : i32, i32
  }
  func.func @transform_9(%arg0: i32) -> (i32, i32) {
    %c0_i32 = arith.constant 0 : i32
    %c0_i32_0 = arith.constant 0 : i32
    %c0_i32_1 = arith.constant 0 : i32
    return %c0_i32, %c0_i32_0 : i32, i32
  }
  func.func @transform_10(%arg0: i32) -> (i32, i32) {
    %c0_i32 = arith.constant 0 : i32
    %c0_i32_0 = arith.constant 0 : i32
    return %arg0, %c0_i32 : i32, i32
  }
}

</mosaic_0001>

<llo_original>
// kernel: hand_ldm_forward.1
$region0: #{hand_ldm_forward.1}
  #allocation0 [shape = 'u32[]', space=smem, size = 0x4, offset = 0x4, fixed_abs, tag = 'smem constant byte address 0x4 - core index']
  #allocation1 [shape = 'u32[144,128]{1,0:T(1,128)}', space=vmem, size = 0x12000, scoped, tag = 'internal scratch']
  %s0 = inlined_call_operand.vmem [shape: f32[16,54], index: 0, kind: input, shape index: {}]
  %s1 = inlined_call_operand.vmem [shape: f32[16,90], index: 1, kind: input, shape index: {}]
  %s2 = inlined_call_operand.vmem [shape: f32[16,90], index: 2, kind: input, shape index: {}]
  %s3 = inlined_call_operand.vmem [shape: bf16[54,320], index: 3, kind: input, shape index: {}]
  %s4 = inlined_call_operand.vmem [shape: bf16[90,320], index: 4, kind: input, shape index: {}]
  %s5 = inlined_call_operand.vmem [shape: bf16[90,320], index: 5, kind: input, shape index: {}]
  %s6 = inlined_call_operand.vmem [shape: bf16[192,160], index: 6, kind: input, shape index: {}]
  %s7 = inlined_call_operand.vmem [shape: bf16[128,32], index: 7, kind: input, shape index: {}]
  %s8 = inlined_call_operand.vmem [shape: f32[1,320], index: 8, kind: input, shape index: {}]
  %s9 = inlined_call_operand.vmem [shape: f32[1,128], index: 9, kind: input, shape index: {}]
  %s10 = inlined_call_operand.vmem [shape: f32[16,128], index: 10, kind: output, shape index: {}]
  %s11 = sld [smem:[#allocation0]]
  $region50: #{hand_ldm_forward.1} parent=0
    _
  %s13 = ssub.s32 1, %s11
  %s14 = scalar_select 0, %s13, %s11
  // Predicated region
  $region2: #{hand_ldm_forward.1} parent=0 // pred_check
    _
  $region3: #{hand_ldm_forward.1} parent=0 // pred_check_branch
    %16 = sbr.rel (0) target = $region5
  $region4: #{hand_ldm_forward.1} parent=0 // pred_region
    _
  $region5: #{hand_ldm_forward.1} parent=0 // pred_fallthru
    _
  // Predicated region
  $region6: #{hand_ldm_forward.1} parent=0 // pred_check
    _
  $region7: #{hand_ldm_forward.1} parent=0 // pred_check_branch
    %18 = sbr.rel (0) target = $region9
  $region8: #{hand_ldm_forward.1} parent=0 // pred_region
    _
  $region9: #{hand_ldm_forward.1} parent=0 // pred_fallthru
    _
  // Predicated region
  $region10: #{hand_ldm_forward.1} parent=0 // pred_check
    _
  $region11: #{hand_ldm_forward.1} parent=0 // pred_check_branch
    %20 = sbr.rel (0) target = $region13
  $region12: #{hand_ldm_forward.1} parent=0 // pred_region
    _
  $region13: #{hand_ldm_forward.1} parent=0 // pred_fallthru
    _
  // Predicated region
  $region14: #{hand_ldm_forward.1} parent=0 // pred_check
    _
  $region15: #{hand_ldm_forward.1} parent=0 // pred_check_branch
    %22 = sbr.rel (0) target = $region17
  $region16: #{hand_ldm_forward.1} parent=0 // pred_region
    _
  $region17: #{hand_ldm_forward.1} parent=0 // pred_fallthru
    _
  // Predicated region
  $region18: #{hand_ldm_forward.1} parent=0 // pred_check
    _
  $region19: #{hand_ldm_forward.1} parent=0 // pred_check_branch
    %24 = sbr.rel (0) target = $region21
  $region20: #{hand_ldm_forward.1} parent=0 // pred_region
    _
  $region21: #{hand_ldm_forward.1} parent=0 // pred_fallthru
    _
  // Predicated region
  $region22: #{hand_ldm_forward.1} parent=0 // pred_check
    _
  $region23: #{hand_ldm_forward.1} parent=0 // pred_check_branch
    %26 = sbr.rel (0) target = $region25
  $region24: #{hand_ldm_forward.1} parent=0 // pred_region
    _
  $region25: #{hand_ldm_forward.1} parent=0 // pred_fallthru
    _
  // Predicated region
  $region26: #{hand_ldm_forward.1} parent=0 // pred_check
    _
  $region27: #{hand_ldm_forward.1} parent=0 // pred_check_branch
    %28 = sbr.rel (0) target = $region29
  $region28: #{hand_ldm_forward.1} parent=0 // pred_region
    _
  $region29: #{hand_ldm_forward.1} parent=0 // pred_fallthru
    _
  // Predicated region
  $region30: #{hand_ldm_forward.1} parent=0 // pred_check
    _
  $region31: #{hand_ldm_forward.1} parent=0 // pred_check_branch
    %30 = sbr.rel (0) target = $region33
  $region32: #{hand_ldm_forward.1} parent=0 // pred_region
    _
  $region33: #{hand_ldm_forward.1} parent=0 // pred_fallthru
    _
  // Predicated region
  $region34: #{hand_ldm_forward.1} parent=0 // pred_check
    _
  $region35: #{hand_ldm_forward.1} parent=0 // pred_check_branch
    %32 = sbr.rel (0) target = $region37
  $region36: #{hand_ldm_forward.1} parent=0 // pred_region
    _
  $region37: #{hand_ldm_forward.1} parent=0 // pred_fallthru
    _
  // Predicated region
  $region38: #{hand_ldm_forward.1} parent=0 // pred_check
    _
  $region39: #{hand_ldm_forward.1} parent=0 // pred_check_branch
    %34 = sbr.rel (0) target = $region41
  $region40: #{hand_ldm_forward.1} parent=0 // pred_region
    _
  $region41: #{hand_ldm_forward.1} parent=0 // pred_fallthru
    _
  %v36 = vld [vmem:[%s0] sm:$0xff]
  %v37 = vld [vmem:[%s0 + $0x8] sm:$0xff]
  %v38 = vpack.c.bf16 %v37, %v36
  %v39 = vld [vmem:[%s1] sm:$0xff]
  %v40 = vld [vmem:[%s1 + $0x8] sm:$0xff]
  %v41 = vpack.c.bf16 %v40, %v39
  %v42 = vld [vmem:[%s2] sm:$0xff]
  %v43 = vld [vmem:[%s2 + $0x8] sm:$0xff]
  %v44 = vpack.c.bf16 %v43, %v42
  %v45 = vld [vmem:[%s3] sm:$0xff]
  %v46 = vld [vmem:[%s3 + $0x8] sm:$0xf]
  %v47 = vld [vmem:[%s3 + $0xc] sm:$0xff]
  %v48 = vld [vmem:[%s3 + $0x14] sm:$0xf]
  %v49 = vld [vmem:[%s3 + $0x18] sm:$0xff]
  %v50 = vld [vmem:[%s3 + $0x20] sm:$0xf]
  %v51 = vld [vmem:[%s3 + $0x24] sm:$0xff]
  %v52 = vld [vmem:[%s3 + $0x2c] sm:$0xf]
  %v53 = vld [vmem:[%s3 + $0x30] sm:$0xff]
  %v54 = vld [vmem:[%s3 + $0x38] sm:$0xf]
  %v55 = vld [vmem:[%s3 + $0x3c] sm:$0xff]
  %v56 = vld [vmem:[%s3 + $0x44] sm:$0xf]
  %v57 = vld [vmem:[%s3 + $0x48] sm:$0x77]
  %v58 = vld [vmem:[%s3 + $0x50] sm:$0x7]
  %v59 = vld [vmem:[%s4] sm:$0xff]
  %v60 = vld [vmem:[%s4 + $0x8] sm:$0xf]
  %v61 = vld [vmem:[%s4 + $0xc] sm:$0xff]
  %v62 = vld [vmem:[%s4 + $0x14] sm:$0xf]
  %v63 = vld [vmem:[%s4 + $0x18] sm:$0xff]
  %v64 = vld [vmem:[%s4 + $0x20] sm:$0xf]
  %v65 = vld [vmem:[%s4 + $0x24] sm:$0xff]
  %v66 = vld [vmem:[%s4 + $0x2c] sm:$0xf]
  %v67 = vld [vmem:[%s4 + $0x30] sm:$0xff]
  %v68 = vld [vmem:[%s4 + $0x38] sm:$0xf]
  %v69 = vld [vmem:[%s4 + $0x3c] sm:$0xff]
  %v70 = vld [vmem:[%s4 + $0x44] sm:$0xf]
  %v71 = vld [vmem:[%s4 + $0x48] sm:$0xff]
  %v72 = vld [vmem:[%s4 + $0x50] sm:$0xf]
  %v73 = vld [vmem:[%s4 + $0x54] sm:$0xff]
  %v74 = vld [vmem:[%s4 + $0x5c] sm:$0xf]
  %v75 = vld [vmem:[%s4 + $0x60] sm:$0xff]
  %v76 = vld [vmem:[%s4 + $0x68] sm:$0xf]
  %v77 = vld [vmem:[%s4 + $0x6c] sm:$0xff]
  %v78 = vld [vmem:[%s4 + $0x74] sm:$0xf]
  %v79 = vld [vmem:[%s4 + $0x78] sm:$0xff]
  %v80 = vld [vmem:[%s4 + $0x80] sm:$0xf]
  %v81 = vld [vmem:[%s4 + $0x84] sm:$0x11]
  %v82 = vld [vmem:[%s4 + $0x8c] sm:$0x1]
  %v107 = vunpack.c.l.b16 %v59
  %v108 = vunpack.c.h.b16 %v59
  %v109 = vunpack.c.l.b16 %v60
  %v110 = vunpack.c.l.b16 %v61
  %v111 = vunpack.c.h.b16 %v61
  %v112 = vunpack.c.l.b16 %v62
  %v113 = vunpack.c.l.b16 %v63
  %v114 = vunpack.c.h.b16 %v63
  %v115 = vunpack.c.l.b16 %v64
  %v116 = vunpack.c.l.b16 %v65
  %v117 = vunpack.c.h.b16 %v65
  %v118 = vunpack.c.l.b16 %v66
  %v119 = vunpack.c.l.b16 %v67
  %v120 = vunpack.c.h.b16 %v67
  %v121 = vunpack.c.l.b16 %v68
  %v122 = vunpack.c.l.b16 %v69
  %v123 = vunpack.c.h.b16 %v69
  %v124 = vunpack.c.l.b16 %v70
  %v125 = vunpack.c.l.b16 %v71
  %v126 = vunpack.c.h.b16 %v71
  %v127 = vunpack.c.l.b16 %v72
  %v128 = vunpack.c.l.b16 %v73
  %v129 = vunpack.c.h.b16 %v73
  %v130 = vunpack.c.l.b16 %v74
  %v131 = vunpack.c.l.b16 %v75
  %v132 = vunpack.c.h.b16 %v75
  %v133 = vunpack.c.l.b16 %v76
  %v134 = vunpack.c.l.b16 %v77
  %v135 = vunpack.c.h.b16 %v77
  %v136 = vunpack.c.l.b16 %v78
  %v137 = vunpack.c.l.b16 %v79
  %v138 = vunpack.c.h.b16 %v79
  %v139 = vunpack.c.l.b16 %v80
  %v140 = vunpack.c.l.b16 %v81
  %v141 = vunpack.c.h.b16 %v81
  %v142 = vunpack.c.l.b16 %v82
  %v143 = vpack.c.b16 %v110, %v107
  %v144 = vpack.c.b16 %v111, %v108
  %v145 = vpack.c.b16 %v112, %v109
  %v146 = vpack.c.b16 %v116, %v113
  %v147 = vpack.c.b16 %v117, %v114
  %v148 = vpack.c.b16 %v118, %v115
  %v149 = vpack.c.b16 %v122, %v119
  %v150 = vpack.c.b16 %v123, %v120
  %v151 = vpack.c.b16 %v124, %v121
  %v152 = vpack.c.b16 %v128, %v125
  %v153 = vpack.c.b16 %v129, %v126
  %v154 = vpack.c.b16 %v130, %v127
  %v155 = vpack.c.b16 %v134, %v131
  %v156 = vpack.c.b16 %v135, %v132
  %v157 = vpack.c.b16 %v136, %v133
  %v158 = vpack.c.b16 %v140, %v137
  %v159 = vpack.c.b16 %v141, %v138
  %v160 = vpack.c.b16 %v142, %v139
  %vm176 = vcmask 736256
  %v178 = vsel %vm176, %v41, 0
  %vm180 = vcmask 1044480
  %v182 = vsel %vm180, %v158, 0
  %v185 = vsel %vm180, %v159, 0
  %v188 = vsel %vm180, %v160, 0
  %190 = vmatprep.subr.bf16.mxu0 %v144
  %191 = vmatpush1.bf16.msra.mxu0 %v143
  %192 = vmatprep.subr.bf16.mxu0 %v147
  %193 = vmatpush1.bf16.msra.mxu0 %v146
  %194 = vmatprep.subr.bf16.mxu0 %v150
  %195 = vmatpush1.bf16.msra.mxu0 %v149
  %196 = vmatprep.subr.bf16.mxu0 %v153
  %197 = vmatpush1.bf16.msra.mxu0 %v152
  %198 = vmatprep.subr.bf16.mxu0 %v156
  %199 = vmatpush1.bf16.msra.mxu0 %v155
  %200 = vmatprep.subr.bf16.mxu0 %v185
  %201 = vmatpush1.bf16.msra.mxu0 %v182
  %202 = vmatprep.subr.bf16.mxu0 0
  %203 = vmatpush1.bf16.msra.mxu0 0
  %204 = vmatprep.subr.bf16.mxu0 0
  %205 = vmatpush1.bf16.msra.mxu0 0
  %206 = vmatprep.subr.bf16.mxu0 0
  %207 = vmatpush1.bf16.msra.mxu0 0
  %208 = vmatprep.subr.bf16.mxu0 0
  %209 = vmatpush1.bf16.msra.mxu0 0
  %210 = vmatprep.subr.bf16.mxu0 0
  %211 = vmatpush1.bf16.msra.mxu0 0
  %212 = vmatprep.subr.bf16.mxu0 0
  %213 = vmatpush1.bf16.msra.mxu0 0
  %214 = vmatprep.subr.bf16.mxu0 0
  %215 = vmatpush1.bf16.msra.mxu0 0
  %216 = vmatprep.subr.bf16.mxu0 0
  %217 = vmatpush1.bf16.msra.mxu0 0
  %218 = vmatprep.subr.bf16.mxu0 0
  %219 = vmatpush1.bf16.msra.mxu0 0
  %220 = vmatprep.subr.bf16.mxu0 0
  %221 = vmatpush1.bf16.msra.mxu0 0
  %222 = vmatprep.mubr.bf16.mxu0 0
  %223 = vmatmul.mubr.bf16.gmra.mrb[0].mxu0 %v178
  %v224 = vpop.f32.mrb[0].mxu0
  %v225 = vadd.f32 0.0, %v224
  %v226 = vpop.f32.mrb[0].mxu0
  %v227 = vadd.f32 0.0, %v226
  %v228 = vpop.f32.mrb[0].mxu0
  %v229 = vadd.f32 0.0, %v228
  %v230 = vpop.f32.mrb[0].mxu0
  %v231 = vadd.f32 0.0, %v230
  %232 = vdwg.mxu0
  %233 = vmatprep.subr.bf16.mxu0 0
  %234 = vmatpush1.bf16.msra.mxu0 %v145
  %235 = vmatprep.subr.bf16.mxu0 0
  %236 = vmatpush1.bf16.msra.mxu0 %v148
  %237 = vmatprep.subr.bf16.mxu0 0
  %238 = vmatpush1.bf16.msra.mxu0 %v151
  %239 = vmatprep.subr.bf16.mxu0 0
  %240 = vmatpush1.bf16.msra.mxu0 %v154
  %241 = vmatprep.subr.bf16.mxu0 0
  %242 = vmatpush1.bf16.msra.mxu0 %v157
  %243 = vmatprep.subr.bf16.mxu0 0
  %244 = vmatpush1.bf16.msra.mxu0 %v188
  %245 = vmatprep.subr.bf16.mxu0 0
  %246 = vmatpush1.bf16.msra.mxu0 0
  %247 = vmatprep.subr.bf16.mxu0 0
  %248 = vmatpush1.bf16.msra.mxu0 0
  %249 = vmatprep.subr.bf16.mxu0 0
  %250 = vmatpush1.bf16.msra.mxu0 0
  %251 = vmatprep.subr.bf16.mxu0 0
  %252 = vmatpush1.bf16.msra.mxu0 0
  %253 = vmatprep.subr.bf16.mxu0 0
  %254 = vmatpush1.bf16.msra.mxu0 0
  %255 = vmatprep.subr.bf16.mxu0 0
  %256 = vmatpush1.bf16.msra.mxu0 0
  %257 = vmatprep.subr.bf16.mxu0 0
  %258 = vmatpush1.bf16.msra.mxu0 0
  %259 = vmatprep.subr.bf16.mxu0 0
  %260 = vmatpush1.bf16.msra.mxu0 0
  %261 = vmatprep.subr.bf16.mxu0 0
  %262 = vmatpush1.bf16.msra.mxu0 0
  %263 = vmatprep.subr.bf16.mxu0 0
  %264 = vmatpush1.bf16.msra.mxu0 0
  %265 = vmatprep.mubr.bf16.mxu0 0
  %266 = vmatmul.mubr.bf16.gmra.mrb[0].mxu0 %v178
  %v267 = vpop.f32.mrb[0].mxu0
  %v268 = vadd.f32 0.0, %v267
  %v269 = vpop.f32.mrb[0].mxu0
  %v270 = vpop.f32.mrb[0].mxu0
  %v271 = vadd.f32 0.0, %v270
  %v272 = vpop.f32.mrb[0].mxu0
  %273 = vdwg.mxu0
  %v288 = vunpack.c.l.b16 %v45
  %v289 = vunpack.c.h.b16 %v45
  %v290 = vunpack.c.l.b16 %v46
  %v291 = vunpack.c.l.b16 %v47
  %v292 = vunpack.c.h.b16 %v47
  %v293 = vunpack.c.l.b16 %v48
  %v294 = vunpack.c.l.b16 %v49
  %v295 = vunpack.c.h.b16 %v49
  %v296 = vunpack.c.l.b16 %v50
  %v297 = vunpack.c.l.b16 %v51
  %v298 = vunpack.c.h.b16 %v51
  %v299 = vunpack.c.l.b16 %v52
  %v300 = vunpack.c.l.b16 %v53
  %v301 = vunpack.c.h.b16 %v53
  %v302 = vunpack.c.l.b16 %v54
  %v303 = vunpack.c.l.b16 %v55
  %v304 = vunpack.c.h.b16 %v55
  %v305 = vunpack.c.l.b16 %v56
  %v306 = vunpack.c.l.b16 %v57
  %v307 = vunpack.c.h.b16 %v57
  %v308 = vunpack.c.l.b16 %v58
  %v309 = vpack.c.b16 %v291, %v288
  %v310 = vpack.c.b16 %v292, %v289
  %v311 = vpack.c.b16 %v293, %v290
  %v312 = vpack.c.b16 %v297, %v294
  %v313 = vpack.c.b16 %v298, %v295
  %v314 = vpack.c.b16 %v299, %v296
  %v315 = vpack.c.b16 %v303, %v300
  %v316 = vpack.c.b16 %v304, %v301
  %v317 = vpack.c.b16 %v305, %v302
  %v318 = vpack.c.b16 %v306, %v306
  %v319 = vpack.c.b16 %v307, %v307
  %v320 = vpack.c.b16 %v308, %v308
  %vm330 = vcmask 441344
  %v332 = vsel %vm330, %v38, 0
  %vm334 = vcmask 1042432
  %v336 = vsel %vm334, %v318, 0
  %v339 = vsel %vm334, %v319, 0
  %v342 = vsel %vm334, %v320, 0
  %344 = vmatprep.subr.bf16.mxu0 %v310
  %345 = vmatpush1.bf16.msra.mxu0 %v309
  %346 = vmatprep.subr.bf16.mxu0 %v313
  %347 = vmatpush1.bf16.msra.mxu0 %v312
  %348 = vmatprep.subr.bf16.mxu0 %v316
  %349 = vmatpush1.bf16.msra.mxu0 %v315
  %350 = vmatprep.subr.bf16.mxu0 %v339
  %351 = vmatpush1.bf16.msra.mxu0 %v336
  %352 = vmatprep.subr.bf16.mxu0 0
  %353 = vmatpush1.bf16.msra.mxu0 0
  %354 = vmatprep.subr.bf16.mxu0 0
  %355 = vmatpush1.bf16.msra.mxu0 0
  %356 = vmatprep.subr.bf16.mxu0 0
  %357 = vmatpush1.bf16.msra.mxu0 0
  %358 = vmatprep.subr.bf16.mxu0 0
  %359 = vmatpush1.bf16.msra.mxu0 0
  %360 = vmatprep.subr.bf16.mxu0 0
  %361 = vmatpush1.bf16.msra.mxu0 0
  %362 = vmatprep.subr.bf16.mxu0 0
  %363 = vmatpush1.bf16.msra.mxu0 0
  %364 = vmatprep.subr.bf16.mxu0 0
  %365 = vmatpush1.bf16.msra.mxu0 0
  %366 = vmatprep.subr.bf16.mxu0 0
  %367 = vmatpush1.bf16.msra.mxu0 0
  %368 = vmatprep.subr.bf16.mxu0 0
  %369 = vmatpush1.bf16.msra.mxu0 0
  %370 = vmatprep.subr.bf16.mxu0 0
  %371 = vmatpush1.bf16.msra.mxu0 0
  %372 = vmatprep.subr.bf16.mxu0 0
  %373 = vmatpush1.bf16.msra.mxu0 0
  %374 = vmatprep.subr.bf16.mxu0 0
  %375 = vmatpush1.bf16.msra.mxu0 0
  %376 = vmatprep.mubr.bf16.mxu0 0
  %377 = vmatmul.mubr.bf16.gmra.mrb[0].mxu0 %v332
  %v378 = vpop.f32.mrb[0].mxu0
  %v379 = vadd.f32 %v225, %v378
  %v380 = vpop.f32.mrb[0].mxu0
  %v381 = vadd.f32 %v227, %v380
  %v382 = vpop.f32.mrb[0].mxu0
  %v383 = vadd.f32 %v229, %v382
  %v384 = vpop.f32.mrb[0].mxu0
  %v385 = vadd.f32 %v231, %v384
  %386 = vdwg.mxu0
  %387 = vmatprep.subr.bf16.mxu0 0
  %388 = vmatpush1.bf16.msra.mxu0 %v311
  %389 = vmatprep.subr.bf16.mxu0 0
  %390 = vmatpush1.bf16.msra.mxu0 %v314
  %391 = vmatprep.subr.bf16.mxu0 0
  %392 = vmatpush1.bf16.msra.mxu0 %v317
  %393 = vmatprep.subr.bf16.mxu0 0
  %394 = vmatpush1.bf16.msra.mxu0 %v342
  %395 = vmatprep.subr.bf16.mxu0 0
  %396 = vmatpush1.bf16.msra.mxu0 0
  %397 = vmatprep.subr.bf16.mxu0 0
  %398 = vmatpush1.bf16.msra.mxu0 0
  %399 = vmatprep.subr.bf16.mxu0 0
  %400 = vmatpush1.bf16.msra.mxu0 0
  %401 = vmatprep.subr.bf16.mxu0 0
  %402 = vmatpush1.bf16.msra.mxu0 0
  %403 = vmatprep.subr.bf16.mxu0 0
  %404 = vmatpush1.bf16.msra.mxu0 0
  %405 = vmatprep.subr.bf16.mxu0 0
  %406 = vmatpush1.bf16.msra.mxu0 0
  %407 = vmatprep.subr.bf16.mxu0 0
  %408 = vmatpush1.bf16.msra.mxu0 0
  %409 = vmatprep.subr.bf16.mxu0 0
  %410 = vmatpush1.bf16.msra.mxu0 0
  %411 = vmatprep.subr.bf16.mxu0 0
  %412 = vmatpush1.bf16.msra.mxu0 0
  %413 = vmatprep.subr.bf16.mxu0 0
  %414 = vmatpush1.bf16.msra.mxu0 0
  %415 = vmatprep.subr.bf16.mxu0 0
  %416 = vmatpush1.bf16.msra.mxu0 0
  %417 = vmatprep.subr.bf16.mxu0 0
  %418 = vmatpush1.bf16.msra.mxu0 0
  %419 = vmatprep.mubr.bf16.mxu0 0
  %420 = vmatmul.mubr.bf16.gmra.mrb[0].mxu0 %v332
  %v421 = vpop.f32.mrb[0].mxu0
  %v422 = vadd.f32 %v268, %v421
  %v423 = vpop.f32.mrb[0].mxu0
  %v424 = vpop.f32.mrb[0].mxu0
  %v425 = vadd.f32 %v271, %v424
  %v426 = vpop.f32.mrb[0].mxu0
  %427 = vdwg.mxu0
  %v428 = vld [vmem:[%s5] sm:$0xff]
  %v429 = vld [vmem:[%s5 + $0x8] sm:$0xf]
  %v430 = vld [vmem:[%s5 + $0xc] sm:$0xff]
  %v431 = vld [vmem:[%s5 + $0x14] sm:$0xf]
  %v432 = vld [vmem:[%s5 + $0x18] sm:$0xff]
  %v433 = vld [vmem:[%s5 + $0x20] sm:$0xf]
  %v434 = vld [vmem:[%s5 + $0x24] sm:$0xff]
  %v435 = vld [vmem:[%s5 + $0x2c] sm:$0xf]
  %v436 = vld [vmem:[%s5 + $0x30] sm:$0xff]
  %v437 = vld [vmem:[%s5 + $0x38] sm:$0xf]
  %v438 = vld [vmem:[%s5 + $0x3c] sm:$0xff]
  %v439 = vld [vmem:[%s5 + $0x44] sm:$0xf]
  %v440 = vld [vmem:[%s5 + $0x48] sm:$0xff]
  %v441 = vld [vmem:[%s5 + $0x50] sm:$0xf]
  %v442 = vld [vmem:[%s5 + $0x54] sm:$0xff]
  %v443 = vld [vmem:[%s5 + $0x5c] sm:$0xf]
  %v444 = vld [vmem:[%s5 + $0x60] sm:$0xff]
  %v445 = vld [vmem:[%s5 + $0x68] sm:$0xf]
  %v446 = vld [vmem:[%s5 + $0x6c] sm:$0xff]
  %v447 = vld [vmem:[%s5 + $0x74] sm:$0xf]
  %v448 = vld [vmem:[%s5 + $0x78] sm:$0xff]
  %v449 = vld [vmem:[%s5 + $0x80] sm:$0xf]
  %v450 = vld [vmem:[%s5 + $0x84] sm:$0x11]
  %v451 = vld [vmem:[%s5 + $0x8c] sm:$0x1]
  %v476 = vunpack.c.l.b16 %v428
  %v477 = vunpack.c.h.b16 %v428
  %v478 = vunpack.c.l.b16 %v429
  %v479 = vunpack.c.l.b16 %v430
  %v480 = vunpack.c.h.b16 %v430
  %v481 = vunpack.c.l.b16 %v431
  %v482 = vunpack.c.l.b16 %v432
  %v483 = vunpack.c.h.b16 %v432
  %v484 = vunpack.c.l.b16 %v433
  %v485 = vunpack.c.l.b16 %v434
  %v486 = vunpack.c.h.b16 %v434
  %v487 = vunpack.c.l.b16 %v435
  %v488 = vunpack.c.l.b16 %v436
  %v489 = vunpack.c.h.b16 %v436
  %v490 = vunpack.c.l.b16 %v437
  %v491 = vunpack.c.l.b16 %v438
  %v492 = vunpack.c.h.b16 %v438
  %v493 = vunpack.c.l.b16 %v439
  %v494 = vunpack.c.l.b16 %v440
  %v495 = vunpack.c.h.b16 %v440
  %v496 = vunpack.c.l.b16 %v441
  %v497 = vunpack.c.l.b16 %v442
  %v498 = vunpack.c.h.b16 %v442
  %v499 = vunpack.c.l.b16 %v443
  %v500 = vunpack.c.l.b16 %v444
  %v501 = vunpack.c.h.b16 %v444
  %v502 = vunpack.c.l.b16 %v445
  %v503 = vunpack.c.l.b16 %v446
  %v504 = vunpack.c.h.b16 %v446
  %v505 = vunpack.c.l.b16 %v447
  %v506 = vunpack.c.l.b16 %v448
  %v507 = vunpack.c.h.b16 %v448
  %v508 = vunpack.c.l.b16 %v449
  %v509 = vunpack.c.l.b16 %v450
  %v510 = vunpack.c.h.b16 %v450
  %v511 = vunpack.c.l.b16 %v451
  %v512 = vpack.c.b16 %v479, %v476
  %v513 = vpack.c.b16 %v480, %v477
  %v514 = vpack.c.b16 %v481, %v478
  %v515 = vpack.c.b16 %v485, %v482
  %v516 = vpack.c.b16 %v486, %v483
  %v517 = vpack.c.b16 %v487, %v484
  %v518 = vpack.c.b16 %v491, %v488
  %v519 = vpack.c.b16 %v492, %v489
  %v520 = vpack.c.b16 %v493, %v490
  %v521 = vpack.c.b16 %v497, %v494
  %v522 = vpack.c.b16 %v498, %v495
  %v523 = vpack.c.b16 %v499, %v496
  %v524 = vpack.c.b16 %v503, %v500
  %v525 = vpack.c.b16 %v504, %v501
  %v526 = vpack.c.b16 %v505, %v502
  %v527 = vpack.c.b16 %v509, %v506
  %v528 = vpack.c.b16 %v510, %v507
  %v529 = vpack.c.b16 %v511, %v508
  %v546 = vsel %vm176, %v44, 0
  %v549 = vsel %vm180, %v527, 0
  %v552 = vsel %vm180, %v528, 0
  %v555 = vsel %vm180, %v529, 0
  %557 = vmatprep.subr.bf16.mxu0 %v513
  %558 = vmatpush1.bf16.msra.mxu0 %v512
  %559 = vmatprep.subr.bf16.mxu0 %v516
  %560 = vmatpush1.bf16.msra.mxu0 %v515
  %561 = vmatprep.subr.bf16.mxu0 %v519
  %562 = vmatpush1.bf16.msra.mxu0 %v518
  %563 = vmatprep.subr.bf16.mxu0 %v522
  %564 = vmatpush1.bf16.msra.mxu0 %v521
  %565 = vmatprep.subr.bf16.mxu0 %v525
  %566 = vmatpush1.bf16.msra.mxu0 %v524
  %567 = vmatprep.subr.bf16.mxu0 %v552
  %568 = vmatpush1.bf16.msra.mxu0 %v549
  %569 = vmatprep.subr.bf16.mxu0 0
  %570 = vmatpush1.bf16.msra.mxu0 0
  %571 = vmatprep.subr.bf16.mxu0 0
  %572 = vmatpush1.bf16.msra.mxu0 0
  %573 = vmatprep.subr.bf16.mxu0 0
  %574 = vmatpush1.bf16.msra.mxu0 0
  %575 = vmatprep.subr.bf16.mxu0 0
  %576 = vmatpush1.bf16.msra.mxu0 0
  %577 = vmatprep.subr.bf16.mxu0 0
  %578 = vmatpush1.bf16.msra.mxu0 0
  %579 = vmatprep.subr.bf16.mxu0 0
  %580 = vmatpush1.bf16.msra.mxu0 0
  %581 = vmatprep.subr.bf16.mxu0 0
  %582 = vmatpush1.bf16.msra.mxu0 0
  %583 = vmatprep.subr.bf16.mxu0 0
  %584 = vmatpush1.bf16.msra.mxu0 0
  %585 = vmatprep.subr.bf16.mxu0 0
  %586 = vmatpush1.bf16.msra.mxu0 0
  %587 = vmatprep.subr.bf16.mxu0 0
  %588 = vmatpush1.bf16.msra.mxu0 0
  %589 = vmatprep.mubr.bf16.mxu0 0
  %590 = vmatmul.mubr.bf16.gmra.mrb[0].mxu0 %v546
  %v591 = vpop.f32.mrb[0].mxu0
  %v592 = vadd.f32 0.0, %v591
  %v593 = vpop.f32.mrb[0].mxu0
  %v594 = vadd.f32 0.0, %v593
  %v595 = vpop.f32.mrb[0].mxu0
  %v596 = vadd.f32 0.0, %v595
  %v597 = vpop.f32.mrb[0].mxu0
  %v598 = vadd.f32 0.0, %v597
  %599 = vdwg.mxu0
  %600 = vmatprep.subr.bf16.mxu0 0
  %601 = vmatpush1.bf16.msra.mxu0 %v514
  %602 = vmatprep.subr.bf16.mxu0 0
  %603 = vmatpush1.bf16.msra.mxu0 %v517
  %604 = vmatprep.subr.bf16.mxu0 0
  %605 = vmatpush1.bf16.msra.mxu0 %v520
  %606 = vmatprep.subr.bf16.mxu0 0
  %607 = vmatpush1.bf16.msra.mxu0 %v523
  %608 = vmatprep.subr.bf16.mxu0 0
  %609 = vmatpush1.bf16.msra.mxu0 %v526
  %610 = vmatprep.subr.bf16.mxu0 0
  %611 = vmatpush1.bf16.msra.mxu0 %v555
  %612 = vmatprep.subr.bf16.mxu0 0
  %613 = vmatpush1.bf16.msra.mxu0 0
  %614 = vmatprep.subr.bf16.mxu0 0
  %615 = vmatpush1.bf16.msra.mxu0 0
  %616 = vmatprep.subr.bf16.mxu0 0
  %617 = vmatpush1.bf16.msra.mxu0 0
  %618 = vmatprep.subr.bf16.mxu0 0
  %619 = vmatpush1.bf16.msra.mxu0 0
  %620 = vmatprep.subr.bf16.mxu0 0
  %621 = vmatpush1.bf16.msra.mxu0 0
  %622 = vmatprep.subr.bf16.mxu0 0
  %623 = vmatpush1.bf16.msra.mxu0 0
  %624 = vmatprep.subr.bf16.mxu0 0
  %625 = vmatpush1.bf16.msra.mxu0 0
  %626 = vmatprep.subr.bf16.mxu0 0
  %627 = vmatpush1.bf16.msra.mxu0 0
  %628 = vmatprep.subr.bf16.mxu0 0
  %629 = vmatpush1.bf16.msra.mxu0 0
  %630 = vmatprep.subr.bf16.mxu0 0
  %631 = vmatpush1.bf16.msra.mxu0 0
  %632 = vmatprep.mubr.bf16.mxu0 0
  %633 = vmatmul.mubr.bf16.gmra.mrb[0].mxu0 %v546
  %v634 = vpop.f32.mrb[0].mxu0
  %v635 = vadd.f32 0.0, %v634
  %v636 = vpop.f32.mrb[0].mxu0
  %v637 = vpop.f32.mrb[0].mxu0
  %v638 = vadd.f32 0.0, %v637
  %v639 = vpop.f32.mrb[0].mxu0
  %640 = vdwg.mxu0
  %v641 = vadd.f32 %v379, %v592
  %v642 = vadd.f32 %v381, %v594
  %v643 = vadd.f32 %v422, %v635
  %v644 = vadd.f32 %v383, %v596
  %v645 = vadd.f32 %v385, %v598
  %v646 = vadd.f32 %v425, %v638
  %v647 = vld [vmem:[%s8] sm:$0x7]
  %v649 = vlaneseq
  %v650 = vshrl.u32 %v649, 7
  %v651 = vsub.s32 0, %v650
  %v652 = vrot.slane %v647, %v651
  %v653 = vlaneseq
  %v654 = vshrl.u32 %v653, 7
  %v655 = vsub.s32 1, %v654
  %v656 = vrot.slane %v647, %v655
  %v657 = vlaneseq
  %v658 = vshrl.u32 %v657, 7
  %v659 = vsub.s32 2, %v658
  %v660 = vrot.slane %v647, %v659
  %v664 = vadd.f32 %v641, %v652
  %v665 = vadd.f32 %v642, %v656
  %v666 = vadd.f32 %v643, %v660
  %v667 = vadd.f32 %v644, %v652
  %v668 = vadd.f32 %v645, %v656
  %v669 = vadd.f32 %v646, %v660
  %v670 = vtanh.pop %v665
  %v671 = vtanh.pop %v666
  %v672 = vtanh.pop %v668
  %v673 = vtanh.pop %v669
  %v674 = vpack.c.bf16 %v672, %v670
  %v675 = vpack.c.bf16 %v673, %v671
  %v676 = vld [vmem:[%s6] sm:$0xff]
  %v677 = vld [vmem:[%s6 + $0x8] sm:$0xff]
  %v678 = vld [vmem:[%s6 + $0x10] sm:$0xff]
  %v679 = vld [vmem:[%s6 + $0x18] sm:$0xff]
  %v680 = vld [vmem:[%s6 + $0x20] sm:$0xff]
  %v681 = vld [vmem:[%s6 + $0x28] sm:$0xff]
  %v682 = vld [vmem:[%s6 + $0x30] sm:$0xff]
  %v683 = vld [vmem:[%s6 + $0x38] sm:$0xff]
  %v684 = vld [vmem:[%s6 + $0x40] sm:$0xff]
  %v685 = vld [vmem:[%s6 + $0x48] sm:$0xff]
  %v686 = vld [vmem:[%s6 + $0x50] sm:$0xff]
  %v687 = vld [vmem:[%s6 + $0x58] sm:$0xff]
  %v688 = vld [vmem:[%s6 + $0x60] sm:$0xff]
  %v689 = vld [vmem:[%s6 + $0x68] sm:$0xff]
  %v690 = vld [vmem:[%s6 + $0x70] sm:$0xff]
  %v691 = vld [vmem:[%s6 + $0x78] sm:$0xff]
  %v692 = vld [vmem:[%s6 + $0x80] sm:$0xff]
  %v693 = vld [vmem:[%s6 + $0x88] sm:$0xff]
  %v694 = vld [vmem:[%s6 + $0x90] sm:$0xff]
  %v695 = vld [vmem:[%s6 + $0x98] sm:$0xff]
  %v696 = vld [vmem:[%s6 + $0xa0] sm:$0xff]
  %v697 = vld [vmem:[%s6 + $0xa8] sm:$0xff]
  %v698 = vld [vmem:[%s6 + $0xb0] sm:$0xff]
  %v699 = vld [vmem:[%s6 + $0xb8] sm:$0xff]
  %v724 = vunpack.c.l.b16 %v676
  %v725 = vunpack.c.h.b16 %v676
  %v726 = vunpack.c.l.b16 %v677
  %v727 = vunpack.c.h.b16 %v677
  %v728 = vunpack.c.l.b16 %v678
  %v729 = vunpack.c.h.b16 %v678
  %v730 = vunpack.c.l.b16 %v679
  %v731 = vunpack.c.h.b16 %v679
  %v732 = vunpack.c.l.b16 %v680
  %v733 = vunpack.c.h.b16 %v680
  %v734 = vunpack.c.l.b16 %v681
  %v735 = vunpack.c.h.b16 %v681
  %v736 = vunpack.c.l.b16 %v682
  %v737 = vunpack.c.h.b16 %v682
  %v738 = vunpack.c.l.b16 %v683
  %v739 = vunpack.c.h.b16 %v683
  %v740 = vunpack.c.l.b16 %v684
  %v741 = vunpack.c.h.b16 %v684
  %v742 = vunpack.c.l.b16 %v685
  %v743 = vunpack.c.h.b16 %v685
  %v744 = vunpack.c.l.b16 %v686
  %v745 = vunpack.c.h.b16 %v686
  %v746 = vunpack.c.l.b16 %v687
  %v747 = vunpack.c.h.b16 %v687
  %v748 = vunpack.c.l.b16 %v688
  %v749 = vunpack.c.h.b16 %v688
  %v750 = vunpack.c.l.b16 %v689
  %v751 = vunpack.c.h.b16 %v689
  %v752 = vunpack.c.l.b16 %v690
  %v753 = vunpack.c.h.b16 %v690
  %v754 = vunpack.c.l.b16 %v691
  %v755 = vunpack.c.h.b16 %v691
  %v756 = vunpack.c.l.b16 %v692
  %v757 = vunpack.c.h.b16 %v692
  %v758 = vunpack.c.l.b16 %v693
  %v759 = vunpack.c.h.b16 %v693
  %v760 = vunpack.c.l.b16 %v694
  %v761 = vunpack.c.h.b16 %v694
  %v762 = vunpack.c.l.b16 %v695
  %v763 = vunpack.c.h.b16 %v695
  %v764 = vunpack.c.l.b16 %v696
  %v765 = vunpack.c.h.b16 %v696
  %v766 = vunpack.c.l.b16 %v697
  %v767 = vunpack.c.h.b16 %v697
  %v768 = vunpack.c.l.b16 %v698
  %v769 = vunpack.c.h.b16 %v698
  %v770 = vunpack.c.l.b16 %v699
  %v771 = vunpack.c.h.b16 %v699
  %v772 = vpack.c.b16 %v726, %v724
  %v773 = vpack.c.b16 %v727, %v725
  %v774 = vpack.c.b16 %v730, %v728
  %v775 = vpack.c.b16 %v731, %v729
  %v776 = vpack.c.b16 %v734, %v732
  %v777 = vpack.c.b16 %v735, %v733
  %v778 = vpack.c.b16 %v738, %v736
  %v779 = vpack.c.b16 %v739, %v737
  %v780 = vpack.c.b16 %v742, %v740
  %v781 = vpack.c.b16 %v743, %v741
  %v782 = vpack.c.b16 %v746, %v744
  %v783 = vpack.c.b16 %v747, %v745
  %v784 = vpack.c.b16 %v750, %v748
  %v785 = vpack.c.b16 %v751, %v749
  %v786 = vpack.c.b16 %v754, %v752
  %v787 = vpack.c.b16 %v755, %v753
  %v788 = vpack.c.b16 %v758, %v756
  %v789 = vpack.c.b16 %v759, %v757
  %v790 = vpack.c.b16 %v762, %v760
  %v791 = vpack.c.b16 %v763, %v761
  %v792 = vpack.c.b16 %v766, %v764
  %v793 = vpack.c.b16 %v767, %v765
  %v794 = vpack.c.b16 %v770, %v768
  %v795 = vpack.c.b16 %v771, %v769
  %vm820 = vcmask 523264
  %v822 = vsel %vm820, %v675, 0
  %824 = vmatprep.subr.bf16.mxu0 %v773
  %825 = vmatpush1.bf16.msra.mxu0 %v772
  %826 = vmatprep.subr.bf16.mxu0 %v775
  %827 = vmatpush1.bf16.msra.mxu0 %v774
  %828 = vmatprep.subr.bf16.mxu0 %v777
  %829 = vmatpush1.bf16.msra.mxu0 %v776
  %830 = vmatprep.subr.bf16.mxu0 %v779
  %831 = vmatpush1.bf16.msra.mxu0 %v778
  %832 = vmatprep.subr.bf16.mxu0 %v781
  %833 = vmatpush1.bf16.msra.mxu0 %v780
  %834 = vmatprep.subr.bf16.mxu0 %v783
  %835 = vmatpush1.bf16.msra.mxu0 %v782
  %836 = vmatprep.subr.bf16.mxu0 %v785
  %837 = vmatpush1.bf16.msra.mxu0 %v784
  %838 = vmatprep.subr.bf16.mxu0 %v787
  %839 = vmatpush1.bf16.msra.mxu0 %v786
  %840 = vmatprep.subr.bf16.mxu0 %v789
  %841 = vmatpush1.bf16.msra.mxu0 %v788
  %842 = vmatprep.subr.bf16.mxu0 %v791
  %843 = vmatpush1.bf16.msra.mxu0 %v790
  %844 = vmatprep.subr.bf16.mxu0 %v793
  %845 = vmatpush1.bf16.msra.mxu0 %v792
  %846 = vmatprep.subr.bf16.mxu0 %v795
  %847 = vmatpush1.bf16.msra.mxu0 %v794
  %848 = vmatprep.subr.bf16.mxu0 0
  %849 = vmatpush1.bf16.msra.mxu0 0
  %850 = vmatprep.subr.bf16.mxu0 0
  %851 = vmatpush1.bf16.msra.mxu0 0
  %852 = vmatprep.subr.bf16.mxu0 0
  %853 = vmatpush1.bf16.msra.mxu0 0
  %854 = vmatprep.subr.bf16.mxu0 0
  %855 = vmatpush1.bf16.msra.mxu0 0
  %856 = vmatprep.mubr.bf16.mxu0 %v822
  %857 = vmatmul.mubr.bf16.gmra.mrb[0].mxu0 %v674
  %v858 = vpop.f32.mrb[0].mxu0
  %v859 = vadd.f32 0.0, %v858
  %v860 = vpop.f32.mrb[0].mxu0
  %v861 = vadd.f32 0.0, %v860
  %v862 = vpop.f32.mrb[0].mxu0
  %v863 = vadd.f32 0.0, %v862
  %v864 = vpop.f32.mrb[0].mxu0
  %v865 = vadd.f32 0.0, %v864
  %866 = vdwg.mxu0
  %v867 = vadd.f32 %v859, %v664
  %v868 = vadd.f32 %v863, %v667
  %v869 = vmul.f32 %v867, 0.5
  %v870 = vmul.f32 %v868, 0.5
  %v871 = vmul.f32 %v867, 0.044715
  %v872 = vmul.f32 %v868, 0.044715
  %v873 = vmul.f32 %v871, %v867
  %v874 = vmul.f32 %v872, %v868
  %v875 = vmul.f32 %v873, %v867
  %v876 = vmul.f32 %v874, %v868
  %v877 = vadd.f32 %v867, %v875
  %v878 = vadd.f32 %v868, %v876
  %v879 = vmul.f32 %v877, 0.7978846
  %v880 = vmul.f32 %v878, 0.7978846
  %v881 = vtanh.pop %v879
  %v882 = vtanh.pop %v880
  %v883 = vadd.f32 %v881, 1.0
  %v884 = vadd.f32 %v882, 1.0
  %v885 = vmul.f32 %v869, %v883
  %v886 = vmul.f32 %v870, %v884
  %v887 = vpack.c.bf16 %v886, %v885
  %v888 = vld [vmem:[%s7] sm:$0xf]
  %v889 = vld [vmem:[%s7 + $0x4] sm:$0xf]
  %v890 = vld [vmem:[%s7 + $0x8] sm:$0xf]
  %v891 = vld [vmem:[%s7 + $0xc] sm:$0xf]
  %v892 = vld [vmem:[%s7 + $0x10] sm:$0xf]
  %v893 = vld [vmem:[%s7 + $0x14] sm:$0xf]
  %v894 = vld [vmem:[%s7 + $0x18] sm:$0xf]
  %v895 = vld [vmem:[%s7 + $0x1c] sm:$0xf]
  %v896 = vld [vmem:[%s7 + $0x20] sm:$0xf]
  %v897 = vld [vmem:[%s7 + $0x24] sm:$0xf]
  %v898 = vld [vmem:[%s7 + $0x28] sm:$0xf]
  %v899 = vld [vmem:[%s7 + $0x2c] sm:$0xf]
  %v900 = vld [vmem:[%s7 + $0x30] sm:$0xf]
  %v901 = vld [vmem:[%s7 + $0x34] sm:$0xf]
  %v902 = vld [vmem:[%s7 + $0x38] sm:$0xf]
  %v903 = vld [vmem:[%s7 + $0x3c] sm:$0xf]
  %v920 = vunpack.c.l.b16 %v888
  %v921 = vunpack.c.l.b16 %v889
  %v922 = vunpack.c.l.b16 %v890
  %v923 = vunpack.c.l.b16 %v891
  %v924 = vunpack.c.l.b16 %v892
  %v925 = vunpack.c.l.b16 %v893
  %v926 = vunpack.c.l.b16 %v894
  %v927 = vunpack.c.l.b16 %v895
  %v928 = vunpack.c.l.b16 %v896
  %v929 = vunpack.c.l.b16 %v897
  %v930 = vunpack.c.l.b16 %v898
  %v931 = vunpack.c.l.b16 %v899
  %v932 = vunpack.c.l.b16 %v900
  %v933 = vunpack.c.l.b16 %v901
  %v934 = vunpack.c.l.b16 %v902
  %v935 = vunpack.c.l.b16 %v903
  %v936 = vpack.c.b16 %v921, %v920
  %v937 = vpack.c.b16 %v923, %v922
  %v938 = vpack.c.b16 %v925, %v924
  %v939 = vpack.c.b16 %v927, %v926
  %v940 = vpack.c.b16 %v929, %v928
  %v941 = vpack.c.b16 %v931, %v930
  %v942 = vpack.c.b16 %v933, %v932
  %v943 = vpack.c.b16 %v935, %v934
  %952 = vmatprep.subr.bf16.mxu0 0
  %953 = vmatpush1.bf16.msra.mxu0 %v936
  %954 = vmatprep.subr.bf16.mxu0 0
  %955 = vmatpush1.bf16.msra.mxu0 %v937
  %956 = vmatprep.subr.bf16.mxu0 0
  %957 = vmatpush1.bf16.msra.mxu0 %v938
  %958 = vmatprep.subr.bf16.mxu0 0
  %959 = vmatpush1.bf16.msra.mxu0 %v939
  %960 = vmatprep.subr.bf16.mxu0 0
  %961 = vmatpush1.bf16.msra.mxu0 %v940
  %962 = vmatprep.subr.bf16.mxu0 0
  %963 = vmatpush1.bf16.msra.mxu0 %v941
  %964 = vmatprep.subr.bf16.mxu0 0
  %965 = vmatpush1.bf16.msra.mxu0 %v942
  %966 = vmatprep.subr.bf16.mxu0 0
  %967 = vmatpush1.bf16.msra.mxu0 %v943
  %968 = vmatprep.subr.bf16.mxu0 0
  %969 = vmatpush1.bf16.msra.mxu0 0
  %970 = vmatprep.subr.bf16.mxu0 0
  %971 = vmatpush1.bf16.msra.mxu0 0
  %972 = vmatprep.subr.bf16.mxu0 0
  %973 = vmatpush1.bf16.msra.mxu0 0
  %974 = vmatprep.subr.bf16.mxu0 0
  %975 = vmatpush1.bf16.msra.mxu0 0
  %976 = vmatprep.subr.bf16.mxu0 0
  %977 = vmatpush1.bf16.msra.mxu0 0
  %978 = vmatprep.subr.bf16.mxu0 0
  %979 = vmatpush1.bf16.msra.mxu0 0
  %980 = vmatprep.subr.bf16.mxu0 0
  %981 = vmatpush1.bf16.msra.mxu0 0
  %982 = vmatprep.subr.bf16.mxu0 0
  %983 = vmatpush1.bf16.msra.mxu0 0
  %984 = vmatprep.mubr.bf16.mxu0 0
  %985 = vmatmul.mubr.bf16.gmra.mrb[0].mxu0 %v887
  %v986 = vpop.f32.mrb[0].mxu0
  %v987 = vadd.f32 0.0, %v986
  %v988 = vpop.f32.mrb[0].mxu0
  %v989 = vpop.f32.mrb[0].mxu0
  %v990 = vadd.f32 0.0, %v989
  %v991 = vpop.f32.mrb[0].mxu0
  %992 = vdwg.mxu0
  %995 = vrot.lane.b32.xlu0 %v861, 32
  %v996 = vpop.permute.xlu0 %995
  %997 = vrot.lane.b32.xlu0 %v865, 32
  %v998 = vpop.permute.xlu0 %997
  %vm1001 = vcmask 261120
  %v1002 = vsel %vm1001, %v987, %v996
  %v1003 = vsel %vm1001, %v990, %v998
  %v1004 = vsel %vm820, %v1002, 0.0
  %v1005 = vsel %vm820, %v1003, 0.0
  %v1006 = vld [vmem:[%s9] sm:$0x1]
  %v1008 = vlaneseq
  %v1009 = vshrl.u32 %v1008, 7
  %v1010 = vsub.s32 0, %v1009
  %v1011 = vrot.slane %v1006, %v1010
  %v1013 = vadd.f32 %v1004, %v1011
  %v1014 = vadd.f32 %v1005, %v1011
  %1015 = vst [vmem:[%s10] sm:$0xff] %v1013
  %1016 = vst [vmem:[%s10 + $0x8] sm:$0xff] %v1014
  // Predicated region
  $region42: #{hand_ldm_forward.1} parent=0 // pred_check
    _
  $region43: #{hand_ldm_forward.1} parent=0 // pred_check_branch
    %1018 = sbr.rel (0) target = $region45
  $region44: #{hand_ldm_forward.1} parent=0 // pred_region
    _
  $region45: #{hand_ldm_forward.1} parent=0 // pred_fallthru
    _
  // Predicated region
  $region46: #{hand_ldm_forward.1} parent=0 // pred_check
    _
  $region47: #{hand_ldm_forward.1} parent=0 // pred_check_branch
    %1020 = sbr.rel (0) target = $region49
  $region48: #{hand_ldm_forward.1} parent=0 // pred_region
    _
  $region49: #{hand_ldm_forward.1} parent=0 // pred_fallthru
    _

</llo_original>
